<compile_context>
chip_gen: v7x
topology: tpu7x:2x2x1
jax: 0.10.0
libtpu: 0.0.40
codegen_flags: <defaults>
</compile_context>

<pallas_src>
import functools

import jax
import jax.numpy as jnp
from jax import lax
from jax.experimental import pallas as pl
from jax.experimental.pallas import tpu as pltpu

CHUNK = 512  # inner lane chunk: keeps per-chunk intermediates vreg-resident


def mlp_kernel(x_ref, w1_ref, b1_ref, w2_ref, b2_ref, w3_ref, b3_ref, o_ref):
    # Tiny weights/biases: load once per grid step, hoisted out of the loop.
    w1 = w1_ref[...]   # (16, 1)
    b1 = b1_ref[...]   # (16, 1)
    w2 = w2_ref[...]   # (32, 16)
    b2 = b2_ref[...]   # (32, 1)
    w3 = w3_ref[...]   # (32, 1)  (pre-transposed column of the (1, 32) weight)
    b3 = b3_ref[...]   # (1, 1)

    n_chunks = x_ref.shape[1] // CHUNK  # static: tm is a multiple of CHUNK

    def body(j, carry):
        start = pl.multiple_of(j * CHUNK, 128)
        x = x_ref[:, pl.ds(start, CHUNK)]                          # (1, C)
        # Layer 1 (1 -> 16): K=1 contraction == VPU broadcast FMA.
        h1 = jnp.maximum(w1 * x + b1, 0.0)                         # (16, C)
        # Layer 2 (16 -> 32): the only MXU matmul.
        h2 = jnp.dot(w2, h1, preferred_element_type=jnp.float32) + b2
        h2 = jnp.maximum(h2, 0.0)                                  # (32, C)
        # Layer 3 (32 -> 1): VPU multiply + XLU sublane reduce (keeps w2
        # stationary on the MXU across chunks).
        y = jnp.sum(w3 * h2, axis=0, keepdims=True) + b3           # (1, C)
        o_ref[:, pl.ds(start, CHUNK)] = y.astype(o_ref.dtype)
        return carry

    lax.fori_loop(0, n_chunks, body, 0)


def _round_up(n, m):
    return ((n + m - 1) // m) * m


@functools.partial(jax.jit, static_argnames=("tm",))
def mlp_forward(x, params, *, tm=4096):
    """Forward pass of Linear(1,16) + ReLU + Linear(16,32) + ReLU + Linear(32,1).

    x: (N, 1) float32 (same layout as nn.Linear input).
    params: PyTorch-layout weights (out, in) and biases stored as (out, 1).
    Returns (N, 1) float32.
    """
    N, Din = x.shape
    assert Din == 1, "single-variable regression: in_features must be 1"

    w1, b1, w2, b2, w3, b3 = (params[k] for k in ("w1", "b1", "w2", "b2", "w3", "b3"))

    # Batch-on-lanes: (N, 1) -> (1, N) is a contiguous (free) reshape.
    x_t = x.reshape(1, N)
    # Layer-3 weight as a (32, 1) column so the kernel needs no transpose.
    w3_col = w3.reshape(32, 1)

    # Pipeline tile: multiple of CHUNK, large enough to amortize per-step
    # overhead, capped so the grid keeps >= 2 steps whenever N allows
    # (v7x megacore: 2 TCs sharded over the "parallel" grid axis).
    tm = max(CHUNK, (tm // CHUNK) * CHUNK)
    half_batch = max(CHUNK, _round_up(pl.cdiv(N, 2), CHUNK))
    tm_eff = min(tm, half_batch)
    grid = (pl.cdiv(N, tm_eff),)  # ragged last block masked by Pallas

    def weight_spec(a):
        # Full-array block, constant index map -> fetched once, VMEM-resident.
        return pl.BlockSpec(a.shape, lambda i: (0, 0))

    out = pl.pallas_call(
        mlp_kernel,
        out_shape=jax.ShapeDtypeStruct((1, N), jnp.float32),
        grid_spec=pl.GridSpec(
            grid=grid,
            in_specs=[
                pl.BlockSpec((1, tm_eff), lambda i: (0, i)),   # x tile (lane-dense)
                weight_spec(w1), weight_spec(b1),
                weight_spec(w2), weight_spec(b2),
                weight_spec(w3_col), weight_spec(b3),
            ],
            out_specs=pl.BlockSpec((1, tm_eff), lambda i: (0, i)),
        ),
        compiler_params=pltpu.CompilerParams(
            dimension_semantics=("parallel",),
        ),
    )(x_t, w1, b1, w2, b2, w3_col, b3)

    # (1, N) -> (N, 1): contiguous reshape, no data movement.
    return out.reshape(N, 1)


def init_params(key):
    """Deterministic init matching nn.Linear: weight (out, in), bias (out, 1)."""
    ks = jax.random.split(key, 6)

    def lin(kw, kb, fan_in, fan_out):
        bound = 1.0 / jnp.sqrt(fan_in)
        w = jax.random.uniform(kw, (fan_out, fan_in), jnp.float32, -bound, bound)
        b = jax.random.uniform(kb, (fan_out, 1), jnp.float32, -bound, bound)
        return w, b

    w1, b1 = lin(ks[0], ks[1], 1, 16)
    w2, b2 = lin(ks[2], ks[3], 16, 32)
    w3, b3 = lin(ks[4], ks[5], 32, 1)
    return dict(w1=w1, b1=b1, w2=w2, b2=b2, w3=w3, b3=b3)


def mlp_reference(x, p):
    h1 = jnp.maximum(x @ p["w1"].T + p["b1"].T, 0.0)
    h2 = jnp.maximum(h1 @ p["w2"].T + p["b2"].T, 0.0)
    return h2 @ p["w3"].T + p["b3"].T


if __name__ == "__main__":
    key = jax.random.PRNGKey(0)
    kx, kp = jax.random.split(key)

    # N deliberately not a multiple of the tile to exercise the ragged-block
    # path; single feature per sample, as the module implies.
    N = 1000
    x = jax.random.normal(kx, (N, 1), jnp.float32)
    params = init_params(kp)

    out = jax.block_until_ready(mlp_forward(x, params))

    ref = mlp_reference(x, params)
    assert out.shape == (N, 1) and out.dtype == jnp.float32
    assert jnp.allclose(out, ref, atol=1e-5, rtol=1e-5)
    print("KERNEL_OK")
</pallas_src>

<mosaic_0001>
module attributes {stable_mosaic.version = 11 : i64} {
  func.func @mlp_kernel(%arg0: i32, %arg1: memref<1x512xf32, #tpu.memory_space<vmem>>, %arg2: memref<16x1xf32, #tpu.memory_space<vmem>>, %arg3: memref<16x1xf32, #tpu.memory_space<vmem>>, %arg4: memref<32x16xf32, #tpu.memory_space<vmem>>, %arg5: memref<32x1xf32, #tpu.memory_space<vmem>>, %arg6: memref<32x1xf32, #tpu.memory_space<vmem>>, %arg7: memref<1x1xf32, #tpu.memory_space<vmem>>, %arg8: memref<1x512xf32, #tpu.memory_space<vmem>>) attributes {dimension_semantics = [#tpu.dimension_semantics<parallel>], iteration_bounds = array<i64: 2>, scalar_prefetch = 0 : i64, scratch_operands = 0 : i64, tpu.core_type = #tpu.core_type<tc>, window_params = [{transform_indices = @transform_0, window_bounds = array<i64: 1, 512>}, {pipeline_mode = #tpu.pipeline_mode<synchronous>, transform_indices = @transform_1, window_bounds = array<i64: 16, 1>}, {pipeline_mode = #tpu.pipeline_mode<synchronous>, transform_indices = @transform_2, window_bounds = array<i64: 16, 1>}, {pipeline_mode = #tpu.pipeline_mode<synchronous>, transform_indices = @transform_3, window_bounds = array<i64: 32, 16>}, {pipeline_mode = #tpu.pipeline_mode<synchronous>, transform_indices = @transform_4, window_bounds = array<i64: 32, 1>}, {pipeline_mode = #tpu.pipeline_mode<synchronous>, transform_indices = @transform_5, window_bounds = array<i64: 32, 1>}, {pipeline_mode = #tpu.pipeline_mode<synchronous>, transform_indices = @transform_6, window_bounds = array<i64: 1, 1>}, {transform_indices = @transform_7, window_bounds = array<i64: 1, 512>}]} {
    %c0 = arith.constant 0 : index
    %c0_0 = arith.constant 0 : index
    %0 = vector.load %arg2[%c0, %c0_0] : memref<16x1xf32, #tpu.memory_space<vmem>>, vector<16x1xf32>
    %c0_1 = arith.constant 0 : index
    %c0_2 = arith.constant 0 : index
    %1 = vector.load %arg3[%c0_1, %c0_2] : memref<16x1xf32, #tpu.memory_space<vmem>>, vector<16x1xf32>
    %c0_3 = arith.constant 0 : index
    %c0_4 = arith.constant 0 : index
    %2 = vector.load %arg4[%c0_3, %c0_4] : memref<32x16xf32, #tpu.memory_space<vmem>>, vector<32x16xf32>
    %c0_5 = arith.constant 0 : index
    %c0_6 = arith.constant 0 : index
    %3 = vector.load %arg5[%c0_5, %c0_6] : memref<32x1xf32, #tpu.memory_space<vmem>>, vector<32x1xf32>
    %c0_7 = arith.constant 0 : index
    %c0_8 = arith.constant 0 : index
    %4 = vector.load %arg6[%c0_7, %c0_8] : memref<32x1xf32, #tpu.memory_space<vmem>>, vector<32x1xf32>
    %c0_9 = arith.constant 0 : index
    %c0_10 = arith.constant 0 : index
    %5 = vector.load %arg7[%c0_9, %c0_10] : memref<1x1xf32, #tpu.memory_space<vmem>>, vector<1x1xf32>
    %c0_i32 = arith.constant 0 : i32
    %c512_i32 = arith.constant 512 : i32
    %6 = arith.muli %c0_i32, %c512_i32 : i32
    %7 = tpu.assume_multiple %6, 128 : i32
    %c0_11 = arith.constant 0 : index
    %8 = arith.index_cast %7 : i32 to index
    %9 = vector.load %arg1[%c0_11, %8] : memref<1x512xf32, #tpu.memory_space<vmem>>, vector<1x512xf32>
    %10 = vector.broadcast %0 : vector<16x1xf32> to vector<16x512xf32>
    %11 = vector.broadcast %9 : vector<1x512xf32> to vector<16x512xf32>
    %12 = arith.mulf %10, %11 : vector<16x512xf32>
    %13 = vector.broadcast %1 : vector<16x1xf32> to vector<16x512xf32>
    %14 = arith.addf %12, %13 : vector<16x512xf32>
    %cst = arith.constant 0.000000e+00 : f32
    %15 = vector.broadcast %cst : f32 to vector<16x512xf32>
    %16 = arith.maximumf %14, %15 : vector<16x512xf32>
    %cst_12 = arith.constant dense<0.000000e+00> : vector<32x512xf32>
    %17 = tpu.matmul %2, %16, %cst_12 {dimension_numbers = #tpu.dot_dimension_numbers<[1], [0], [0], [1], [0, 0, 1, 1], [], []>} : vector<32x16xf32>, vector<16x512xf32>, vector<32x512xf32> -> vector<32x512xf32>
    %18 = vector.broadcast %3 : vector<32x1xf32> to vector<32x512xf32>
    %19 = arith.addf %17, %18 : vector<32x512xf32>
    %cst_13 = arith.constant 0.000000e+00 : f32
    %20 = vector.broadcast %cst_13 : f32 to vector<32x512xf32>
    %21 = arith.maximumf %19, %20 : vector<32x512xf32>
    %22 = vector.broadcast %4 : vector<32x1xf32> to vector<32x512xf32>
    %23 = arith.mulf %22, %21 : vector<32x512xf32>
    %cst_14 = arith.constant dense<0.000000e+00> : vector<512xf32>
    %24 = vector.multi_reduction <add>, %23, %cst_14 [0] : vector<32x512xf32> to vector<512xf32>
    %25 = vector.shape_cast %24 : vector<512xf32> to vector<1x512xf32>
    %26 = vector.broadcast %5 : vector<1x1xf32> to vector<1x512xf32>
    %27 = arith.addf %25, %26 : vector<1x512xf32>
    %c0_15 = arith.constant 0 : index
    %28 = arith.index_cast %7 : i32 to index
    %29 = vector.load %arg8[%c0_15, %28] : memref<1x512xf32, #tpu.memory_space<vmem>>, vector<1x512xf32>
    tpu.vector_store %arg8[%c0_15, %28], %27 {strides = array<i32>} : memref<1x512xf32, #tpu.memory_space<vmem>>, vector<1x512xf32>,
    %c1_i32 = arith.constant 1 : i32
    return
  }
  func.func @transform_0(%arg0: i32) -> (i32, i32) {
    %c0_i32 = arith.constant 0 : i32
    %c0_i32_0 = arith.constant 0 : i32
    return %c0_i32, %arg0 : i32, i32
  }
  func.func @transform_1(%arg0: i32) -> (i32, i32) {
    %c0_i32 = arith.constant 0 : i32
    %c0_i32_0 = arith.constant 0 : i32
    %c0_i32_1 = arith.constant 0 : i32
    return %c0_i32, %c0_i32_0 : i32, i32
  }
  func.func @transform_2(%arg0: i32) -> (i32, i32) {
    %c0_i32 = arith.constant 0 : i32
    %c0_i32_0 = arith.constant 0 : i32
    %c0_i32_1 = arith.constant 0 : i32
    return %c0_i32, %c0_i32_0 : i32, i32
  }
  func.func @transform_3(%arg0: i32) -> (i32, i32) {
    %c0_i32 = arith.constant 0 : i32
    %c0_i32_0 = arith.constant 0 : i32
    %c0_i32_1 = arith.constant 0 : i32
    return %c0_i32, %c0_i32_0 : i32, i32
  }
  func.func @transform_4(%arg0: i32) -> (i32, i32) {
    %c0_i32 = arith.constant 0 : i32
    %c0_i32_0 = arith.constant 0 : i32
    %c0_i32_1 = arith.constant 0 : i32
    return %c0_i32, %c0_i32_0 : i32, i32
  }
  func.func @transform_5(%arg0: i32) -> (i32, i32) {
    %c0_i32 = arith.constant 0 : i32
    %c0_i32_0 = arith.constant 0 : i32
    %c0_i32_1 = arith.constant 0 : i32
    return %c0_i32, %c0_i32_0 : i32, i32
  }
  func.func @transform_6(%arg0: i32) -> (i32, i32) {
    %c0_i32 = arith.constant 0 : i32
    %c0_i32_0 = arith.constant 0 : i32
    %c0_i32_1 = arith.constant 0 : i32
    return %c0_i32, %c0_i32_0 : i32, i32
  }
  func.func @transform_7(%arg0: i32) -> (i32, i32) {
    %c0_i32 = arith.constant 0 : i32
    %c0_i32_0 = arith.constant 0 : i32
    return %c0_i32, %arg0 : i32, i32
  }
}

</mosaic_0001>

<llo_original>
// kernel: mlp_forward.1
$region0: #{mlp_forward.1}
  #allocation0 [shape = 'u32[]', space=smem, size = 0x4, offset = 0x4, fixed_abs, tag = 'smem constant byte address 0x4 - core index']
  #allocation1 [shape = 'u32[144,128]{1,0:T(1,128)}', space=vmem, size = 0x12000, scoped, tag = 'internal scratch']
  #allocation2 [shape = 'f32[1,1]{1,0:T(1,128)S(1)}', space=vmem, size = 0x200, scoped, tag = 'scoped memory for mlp_forward.1']
  %s0 = inlined_call_operand.vmem [shape: f32[1,1000], index: 0, kind: input, shape index: {}]
  %s1 = inlined_call_operand.vmem [shape: f32[16,1], index: 1, kind: input, shape index: {}]
  %s2 = inlined_call_operand.vmem [shape: f32[16,1], index: 2, kind: input, shape index: {}]
  %s3 = inlined_call_operand.vmem [shape: f32[32,16], index: 3, kind: input, shape index: {}]
  %s4 = inlined_call_operand.vmem [shape: f32[32,1], index: 4, kind: input, shape index: {}]
  %s5 = inlined_call_operand.vmem [shape: f32[32,1], index: 5, kind: input, shape index: {}]
  %s6 = inlined_call_operand.<no memory space> [shape: f32[1,1], index: 6, kind: input, shape index: {}]
  %s7 = inlined_call_operand.hbm [shape: f32[1,1000], index: 7, kind: output, shape index: {}]
  %s8 = sld [smem:[#allocation0]]
  $region61: #{mlp_forward.1} parent=0
    _
  %s10 = ssub.s32 1, %s8
  %s11 = scalar_select 0, %s10, %s8
  %v12 = vstv %s6
  %13 = vst [vmem:[#allocation2] sm:$0x1] %v12
  $region1: #{mlp_forward.1} parent=0
    #allocation3 [shape = 'u8[4096]{0}', space=vmem, size = 0x1000, scoped, tag = 'output window, operand 0']
    #allocation4 [shape = 's32[2]{0}', space=sflag, size = 0x8, scoped, tag = 'scoped memory for mlp_forward.1']
    %14 = vsyncpa [#allocation4], 0
    %s15 = scalar_lea.sflag [#allocation4], 1
    %16 = vsyncpa %s15, 0
    loop: start=0, step=1, limit=4
    $region2: #{mlp_forward.1} parent=1 // loop_pre_header
      _
    $region3: #{mlp_forward.1} parent=1 // loop_header
      %s18 = sphi 0, %s22
      %p19 = scmp.ge.s32.totalorder %s18, 4
      %s28 = sphi 0, %s30
      %s31 = sphi 0, %s28
      %s32 = sphi 0, %s31
      %s48 = sphi 0, %s32
      %s52 = sphi 0, %s52
      %s54 = sphi 0, %s52
      %s55 = sphi 0, %s54
      %s69 = sphi 0, %s55
      %s73 = sphi 0, %s73
      %s75 = sphi 0, %s73
      %s76 = sphi 0, %s75
      %s90 = sphi 0, %s76
      %s94 = sphi 0, %s94
      %s96 = sphi 0, %s94
      %s97 = sphi 0, %s96
      %s111 = sphi 0, %s97
      %s115 = sphi 0, %s115
      %s117 = sphi 0, %s115
      %s118 = sphi 0, %s117
      %s132 = sphi 0, %s118
      %s136 = sphi 0, %s136
      %s138 = sphi 0, %s136
      %s139 = sphi 0, %s138
      %s153 = sphi 0, %s139
      %s157 = sphi 0, %s157
      %s159 = sphi 0, %s157
      %s160 = sphi 0, %s159
      %s174 = sphi 0, %s160
      %s180 = sphi 0, %s182
      %s183 = sphi 0, %s180
      %s184 = sphi 0, %s183
      %s200 = sphi 0, %s184
    $region4: #{mlp_forward.1} parent=1 // loop_header_branch
      %21 = sbr.rel (%p19) target = $region8
    $region5: #{mlp_forward.1} parent=1 // loop_body
      %s23 = ssub.s32 %s18, 1
      %s24 = ssub.s32 %s18, 2
      %s25 = sadd.s32 %s18, 1
      %s26 = ssub.s32 %s18, %s25
      %p27 = scmp.eq.s32.totalorder %s26, 0
      %s29 = sadd.s32 %s28, 1
      %s30 = scalar_select %p27, %s28, %s29
      %p33 = pneg %p27
      %p34 = scmp.eq.s32.totalorder %s18, 1
      %p35 = por %p33, %p34
      %p36 = scmp.ne.s32.totalorder %s28, %s31
      %p37 = scmp.eq.s32.totalorder %s18, 0
      %p38 = por %p36, %p37
      %p39 = scmp.ne.s32.totalorder %s28, %s31
      %p40 = scmp.eq.s32.totalorder %s23, 1
      %p41 = por %p39, %p40
      %p42 = scmp.ne.s32.totalorder %s31, %s32
      %p43 = scmp.eq.s32.totalorder %s23, 0
      %p44 = por %p42, %p43
      %p45 = scmp.ne.s32.totalorder %s31, %s32
      %p46 = scmp.eq.s32.totalorder %s24, 1
      %p47 = por %p45, %p46
      %p49 = scmp.ne.s32.totalorder %s32, %s48
      %p50 = scmp.eq.s32.totalorder %s24, 0
      %p51 = por %p49, %p50
      %s53 = sadd.s32 %s52, 1
      %p56 = scmp.eq.s32.totalorder %s18, 1
      %p57 = scmp.ne.s32.totalorder %s52, %s54
      %p58 = scmp.eq.s32.totalorder %s18, 0
      %p59 = por %p57, %p58
      %p60 = scmp.ne.s32.totalorder %s52, %s54
      %p61 = scmp.eq.s32.totalorder %s23, 1
      %p62 = por %p60, %p61
      %p63 = scmp.ne.s32.totalorder %s54, %s55
      %p64 = scmp.eq.s32.totalorder %s23, 0
      %p65 = por %p63, %p64
      %p66 = scmp.ne.s32.totalorder %s54, %s55
      %p67 = scmp.eq.s32.totalorder %s24, 1
      %p68 = por %p66, %p67
      %p70 = scmp.ne.s32.totalorder %s55, %s69
      %p71 = scmp.eq.s32.totalorder %s24, 0
      %p72 = por %p70, %p71
      %s74 = sadd.s32 %s73, 1
      %p77 = scmp.eq.s32.totalorder %s18, 1
      %p78 = scmp.ne.s32.totalorder %s73, %s75
      %p79 = scmp.eq.s32.totalorder %s18, 0
      %p80 = por %p78, %p79
      %p81 = scmp.ne.s32.totalorder %s73, %s75
      %p82 = scmp.eq.s32.totalorder %s23, 1
      %p83 = por %p81, %p82
      %p84 = scmp.ne.s32.totalorder %s75, %s76
      %p85 = scmp.eq.s32.totalorder %s23, 0
      %p86 = por %p84, %p85
      %p87 = scmp.ne.s32.totalorder %s75, %s76
      %p88 = scmp.eq.s32.totalorder %s24, 1
      %p89 = por %p87, %p88
      %p91 = scmp.ne.s32.totalorder %s76, %s90
      %p92 = scmp.eq.s32.totalorder %s24, 0
      %p93 = por %p91, %p92
      %s95 = sadd.s32 %s94, 1
      %p98 = scmp.eq.s32.totalorder %s18, 1
      %p99 = scmp.ne.s32.totalorder %s94, %s96
      %p100 = scmp.eq.s32.totalorder %s18, 0
      %p101 = por %p99, %p100
      %p102 = scmp.ne.s32.totalorder %s94, %s96
      %p103 = scmp.eq.s32.totalorder %s23, 1
      %p104 = por %p102, %p103
      %p105 = scmp.ne.s32.totalorder %s96, %s97
      %p106 = scmp.eq.s32.totalorder %s23, 0
      %p107 = por %p105, %p106
      %p108 = scmp.ne.s32.totalorder %s96, %s97
      %p109 = scmp.eq.s32.totalorder %s24, 1
      %p110 = por %p108, %p109
      %p112 = scmp.ne.s32.totalorder %s97, %s111
      %p113 = scmp.eq.s32.totalorder %s24, 0
      %p114 = por %p112, %p113
      %s116 = sadd.s32 %s115, 1
      %p119 = scmp.eq.s32.totalorder %s18, 1
      %p120 = scmp.ne.s32.totalorder %s115, %s117
      %p121 = scmp.eq.s32.totalorder %s18, 0
      %p122 = por %p120, %p121
      %p123 = scmp.ne.s32.totalorder %s115, %s117
      %p124 = scmp.eq.s32.totalorder %s23, 1
      %p125 = por %p123, %p124
      %p126 = scmp.ne.s32.totalorder %s117, %s118
      %p127 = scmp.eq.s32.totalorder %s23, 0
      %p128 = por %p126, %p127
      %p129 = scmp.ne.s32.totalorder %s117, %s118
      %p130 = scmp.eq.s32.totalorder %s24, 1
      %p131 = por %p129, %p130
      %p133 = scmp.ne.s32.totalorder %s118, %s132
      %p134 = scmp.eq.s32.totalorder %s24, 0
      %p135 = por %p133, %p134
      %s137 = sadd.s32 %s136, 1
      %p140 = scmp.eq.s32.totalorder %s18, 1
      %p141 = scmp.ne.s32.totalorder %s136, %s138
      %p142 = scmp.eq.s32.totalorder %s18, 0
      %p143 = por %p141, %p142
      %p144 = scmp.ne.s32.totalorder %s136, %s138
      %p145 = scmp.eq.s32.totalorder %s23, 1
      %p146 = por %p144, %p145
      %p147 = scmp.ne.s32.totalorder %s138, %s139
      %p148 = scmp.eq.s32.totalorder %s23, 0
      %p149 = por %p147, %p148
      %p150 = scmp.ne.s32.totalorder %s138, %s139
      %p151 = scmp.eq.s32.totalorder %s24, 1
      %p152 = por %p150, %p151
      %p154 = scmp.ne.s32.totalorder %s139, %s153
      %p155 = scmp.eq.s32.totalorder %s24, 0
      %p156 = por %p154, %p155
      %s158 = sadd.s32 %s157, 1
      %p161 = scmp.eq.s32.totalorder %s18, 1
      %p162 = scmp.ne.s32.totalorder %s157, %s159
      %p163 = scmp.eq.s32.totalorder %s18, 0
      %p164 = por %p162, %p163
      %p165 = scmp.ne.s32.totalorder %s157, %s159
      %p166 = scmp.eq.s32.totalorder %s23, 1
      %p167 = por %p165, %p166
      %p168 = scmp.ne.s32.totalorder %s159, %s160
      %p169 = scmp.eq.s32.totalorder %s23, 0
      %p170 = por %p168, %p169
      %p171 = scmp.ne.s32.totalorder %s159, %s160
      %p172 = scmp.eq.s32.totalorder %s24, 1
      %p173 = por %p171, %p172
      %p175 = scmp.ne.s32.totalorder %s160, %s174
      %p176 = scmp.eq.s32.totalorder %s24, 0
      %p177 = por %p175, %p176
      %s178 = ssub.s32 %s18, %s25
      %p179 = scmp.eq.s32.totalorder %s178, 0
      %s181 = sadd.s32 %s180, 1
      %s182 = scalar_select %p179, %s180, %s181
      %p185 = pneg %p179
      %p186 = scmp.eq.s32.totalorder %s18, 1
      %p187 = por %p185, %p186
      %p188 = scmp.ne.s32.totalorder %s180, %s183
      %p189 = scmp.eq.s32.totalorder %s18, 0
      %p190 = por %p188, %p189
      %p191 = scmp.ne.s32.totalorder %s180, %s183
      %p192 = scmp.eq.s32.totalorder %s23, 1
      %p193 = por %p191, %p192
      %p194 = scmp.ne.s32.totalorder %s183, %s184
      %p195 = scmp.eq.s32.totalorder %s23, 0
      %p196 = por %p194, %p195
      %p197 = scmp.ne.s32.totalorder %s183, %s184
      %p198 = scmp.eq.s32.totalorder %s24, 1
      %p199 = por %p197, %p198
      %p201 = scmp.ne.s32.totalorder %s184, %s200
      %p202 = scmp.eq.s32.totalorder %s24, 0
      %p203 = por %p201, %p202
      %p204 = scmp.le.s32.totalorder 1, %s18
      %p205 = scmp.lt.s32.totalorder %s18, 3
      %p206 = pnand %p204, %p205
      %p207 = pneg %p206
      // Predicated region
      $region9: #{mlp_forward.1} parent=5 // pred_check
        _
      $region10: #{mlp_forward.1} parent=5 // pred_check_branch
        %209 = sbr.rel (%p206) target = $region12
      $region11: #{mlp_forward.1} parent=5 // pred_region
        %s210 = ssub.s32 %s18, 1
        // Predicated region
        $region13: #{mlp_forward.1} parent=11 // pred_check
          %p211 = pneg %p65
        $region14: #{mlp_forward.1} parent=11 // pred_check_branch
          %213 = sbr.rel (%p211) target = $region16
        $region15: #{mlp_forward.1} parent=11 // pred_region
          _
        $region16: #{mlp_forward.1} parent=11 // pred_fallthru
          _
        // Predicated region
        $region17: #{mlp_forward.1} parent=11 // pred_check
          %p214 = pneg %p86
        $region18: #{mlp_forward.1} parent=11 // pred_check_branch
          %216 = sbr.rel (%p214) target = $region20
        $region19: #{mlp_forward.1} parent=11 // pred_region
          _
        $region20: #{mlp_forward.1} parent=11 // pred_fallthru
          _
        // Predicated region
        $region21: #{mlp_forward.1} parent=11 // pred_check
          %p217 = pneg %p107
        $region22: #{mlp_forward.1} parent=11 // pred_check_branch
          %219 = sbr.rel (%p217) target = $region24
        $region23: #{mlp_forward.1} parent=11 // pred_region
          _
        $region24: #{mlp_forward.1} parent=11 // pred_fallthru
          _
        // Predicated region
        $region25: #{mlp_forward.1} parent=11 // pred_check
          %p220 = pneg %p128
        $region26: #{mlp_forward.1} parent=11 // pred_check_branch
          %222 = sbr.rel (%p220) target = $region28
        $region27: #{mlp_forward.1} parent=11 // pred_region
          _
        $region28: #{mlp_forward.1} parent=11 // pred_fallthru
          _
        // Predicated region
        $region29: #{mlp_forward.1} parent=11 // pred_check
          %p223 = pneg %p149
        $region30: #{mlp_forward.1} parent=11 // pred_check_branch
          %225 = sbr.rel (%p223) target = $region32
        $region31: #{mlp_forward.1} parent=11 // pred_region
          _
        $region32: #{mlp_forward.1} parent=11 // pred_fallthru
          _
        // Predicated region
        $region33: #{mlp_forward.1} parent=11 // pred_check
          %p226 = pneg %p170
        $region34: #{mlp_forward.1} parent=11 // pred_check_branch
          %228 = sbr.rel (%p226) target = $region36
        $region35: #{mlp_forward.1} parent=11 // pred_region
          _
        $region36: #{mlp_forward.1} parent=11 // pred_fallthru
          _
      $region12: #{mlp_forward.1} parent=5 // pred_fallthru
        _
      %p229 = scmp.lt.s32.totalorder %s18, 2
      // Predicated region
      $region37: #{mlp_forward.1} parent=5 // pred_check
        %p230 = pneg %p229
      $region38: #{mlp_forward.1} parent=5 // pred_check_branch
        %232 = sbr.rel (%p230) target = $region40
      $region39: #{mlp_forward.1} parent=5 // pred_region
        // Predicated region
        $region41: #{mlp_forward.1} parent=39 // pred_check
          %p233 = pneg %p38
        $region42: #{mlp_forward.1} parent=39 // pred_check_branch
          %235 = sbr.rel (%p233) target = $region44
        $region43: #{mlp_forward.1} parent=39 // pred_region
          %s236 = smul.u32 4, %s18
          %p237 = scmp.lt.s32.totalorder %s236, 7
          %s238 = scalar_select %p237, %s236, 7
          %s239 = scalar_lea.vmem %s0, %s238
          %s240 = smul.u32 4, %s18
        $region44: #{mlp_forward.1} parent=39 // pred_fallthru
          _
      $region40: #{mlp_forward.1} parent=5 // pred_fallthru
        _
      %p241 = scmp.le.s32.totalorder 1, %s18
      %p242 = scmp.lt.s32.totalorder %s18, 3
      %p243 = pnand %p241, %p242
      %p244 = pneg %p243
      // Predicated region
      $region45: #{mlp_forward.1} parent=5 // pred_check
        _
      $region46: #{mlp_forward.1} parent=5 // pred_check_branch
        %246 = sbr.rel (%p243) target = $region48
      $region47: #{mlp_forward.1} parent=5 // pred_region
        %s247 = ssub.s32 %s18, 1
        %s248 = smul.u32 4, %s23
        %p249 = scmp.lt.s32.totalorder %s248, 7
        %s250 = scalar_select %p249, %s248, 7
        %s251 = scalar_lea.vmem %s0, %s250
        %p252 = pneg %p44
        %p253 = pneg %p41
        %p254 = pneg %p65
        %p255 = pneg %p62
        %p256 = pneg %p86
        %p257 = pneg %p83
        %p258 = pneg %p107
        %p259 = pneg %p104
        %p260 = pneg %p128
        %p261 = pneg %p125
        %p262 = pneg %p149
        %p263 = pneg %p146
        %p264 = pneg %p170
        %p265 = pneg %p167
        %p266 = pneg %p196
        %p267 = pneg %p193
        %s268 = sand.u32 %s183, 1
        %s269 = scalar_lea.sflag [#allocation4], %s268
        %s270 = sand.u32 %s183, 1
        %s271 = smul.addr %s270, 4
        %s272 = scalar_lea.vmem [#allocation3], %s271
        %s273 = smul.u32 4, %s23
        %p274 = scmp.lt.s32.totalorder %s273, 7
        %s275 = scalar_select %p274, %s273, 7
        %s276 = scalar_lea.vmem %s0, %s275
        %s277 = smul.u32 4, %s23
        %s278 = smul.u32 4, %s23
        %v279 = vld [vmem:[%s1] sm:$0xff]
        %v280 = vld [vmem:[%s1 + $0x8] sm:$0xff]
        %v281 = vld [vmem:[%s2] sm:$0xff]
        %v282 = vld [vmem:[%s2 + $0x8] sm:$0xff]
        %v283 = vld [vmem:[%s3] sm:$0xff]
        %v284 = vld [vmem:[%s3 + $0x8] sm:$0xff]
        %v285 = vld [vmem:[%s3 + $0x10] sm:$0xff]
        %v286 = vld [vmem:[%s3 + $0x18] sm:$0xff]
        %v287 = vld [vmem:[%s4] sm:$0xff]
        %v288 = vld [vmem:[%s4 + $0x8] sm:$0xff]
        %v289 = vld [vmem:[%s4 + $0x10] sm:$0xff]
        %v290 = vld [vmem:[%s4 + $0x18] sm:$0xff]
        %v291 = vld [vmem:[%s5] sm:$0xff]
        %v292 = vld [vmem:[%s5 + $0x8] sm:$0xff]
        %v293 = vld [vmem:[%s5 + $0x10] sm:$0xff]
        %v294 = vld [vmem:[%s5 + $0x18] sm:$0xff]
        %v295 = vld [vmem:[#allocation2] sm:$0x1]
        %v296 = vld [vmem:[%s276] sm:$0xf]
        %298 = vset.pattern.permute.xlu0 0
        %299 = vperm.xlu0 %298, %v279
        %v300 = vpop.permute.xlu0 %299
        %303 = vset.pattern.permute.xlu0 0
        %304 = vperm.xlu0 %303, %v280
        %v305 = vpop.permute.xlu0 %304
        %v308 = vlaneseq
        %v309 = vshrl.u32 %v308, 7
        %v310 = vsub.s32 0, %v309
        %v311 = vrot.slane %v296, %v310
        %v312 = vlaneseq
        %v313 = vshrl.u32 %v312, 7
        %v314 = vsub.s32 1, %v313
        %v315 = vrot.slane %v296, %v314
        %v316 = vlaneseq
        %v317 = vshrl.u32 %v316, 7
        %v318 = vsub.s32 2, %v317
        %v319 = vrot.slane %v296, %v318
        %v320 = vlaneseq
        %v321 = vshrl.u32 %v320, 7
        %v322 = vsub.s32 3, %v321
        %v323 = vrot.slane %v296, %v322
        %v328 = vmul.f32 %v300, %v311
        %v329 = vmul.f32 %v300, %v315
        %v330 = vmul.f32 %v300, %v319
        %v331 = vmul.f32 %v300, %v323
        %v332 = vmul.f32 %v305, %v311
        %v333 = vmul.f32 %v305, %v315
        %v334 = vmul.f32 %v305, %v319
        %v335 = vmul.f32 %v305, %v323
        %337 = vset.pattern.permute.xlu0 0
        %338 = vperm.xlu0 %337, %v281
        %v339 = vpop.permute.xlu0 %338
        %342 = vset.pattern.permute.xlu0 0
        %343 = vperm.xlu0 %342, %v282
        %v344 = vpop.permute.xlu0 %343
        %v346 = vadd.f32 %v328, %v339
        %v347 = vadd.f32 %v329, %v339
        %v348 = vadd.f32 %v330, %v339
        %v349 = vadd.f32 %v331, %v339
        %v350 = vadd.f32 %v332, %v344
        %v351 = vadd.f32 %v333, %v344
        %v352 = vadd.f32 %v334, %v344
        %v353 = vadd.f32 %v335, %v344
        %v354 = vmax.f32 %v346, 0.0
        %v355 = vmax.f32 %v347, 0.0
        %v356 = vmax.f32 %v348, 0.0
        %v357 = vmax.f32 %v349, 0.0
        %v358 = vmax.f32 %v350, 0.0
        %v359 = vmax.f32 %v351, 0.0
        %v360 = vmax.f32 %v352, 0.0
        %v361 = vmax.f32 %v353, 0.0
        %363 = vset.pattern.permute.xlu0 0
        %364 = vperm.xlu0 %363, %v287
        %v365 = vpop.permute.xlu0 %364
        %368 = vset.pattern.permute.xlu0 0
        %369 = vperm.xlu0 %368, %v288
        %v370 = vpop.permute.xlu0 %369
        %373 = vset.pattern.permute.xlu0 0
        %374 = vperm.xlu0 %373, %v289
        %v375 = vpop.permute.xlu0 %374
        %378 = vset.pattern.permute.xlu0 0
        %379 = vperm.xlu0 %378, %v290
        %v380 = vpop.permute.xlu0 %379
        %vm382 = vcmask 130048
        %v384 = vsel %vm382, %v283, 0
        %v387 = vsel %vm382, %v284, 0
        %v390 = vsel %vm382, %v285, 0
        %v393 = vsel %vm382, %v286, 0
        %395 = vmatprep.subr.mxu0 %v355
        %396 = vmatpush1.msra.mxu0 %v354
        %397 = vmatprep.subr.mxu0 %v359
        %398 = vmatpush1.msra.mxu0 %v358
        %399 = vmatprep.subr.mxu0 0.0
        %400 = vmatpush1.msra.mxu0 0.0
        %401 = vmatprep.subr.mxu0 0.0
        %402 = vmatpush1.msra.mxu0 0.0
        %403 = vmatprep.subr.mxu0 0.0
        %404 = vmatpush1.msra.mxu0 0.0
        %405 = vmatprep.subr.mxu0 0.0
        %406 = vmatpush1.msra.mxu0 0.0
        %407 = vmatprep.subr.mxu0 0.0
        %408 = vmatpush1.msra.mxu0 0.0
        %409 = vmatprep.subr.mxu0 0.0
        %410 = vmatpush1.msra.mxu0 0.0
        %411 = vmatprep.subr.mxu0 0.0
        %412 = vmatpush1.msra.mxu0 0.0
        %413 = vmatprep.subr.mxu0 0.0
        %414 = vmatpush1.msra.mxu0 0.0
        %415 = vmatprep.subr.mxu0 0.0
        %416 = vmatpush1.msra.mxu0 0.0
        %417 = vmatprep.subr.mxu0 0.0
        %418 = vmatpush1.msra.mxu0 0.0
        %419 = vmatprep.subr.mxu0 0.0
        %420 = vmatpush1.msra.mxu0 0.0
        %421 = vmatprep.subr.mxu0 0.0
        %422 = vmatpush1.msra.mxu0 0.0
        %423 = vmatprep.subr.mxu0 0.0
        %424 = vmatpush1.msra.mxu0 0.0
        %425 = vmatprep.subr.mxu0 0.0
        %426 = vmatpush1.msra.mxu0 0.0
        %427 = vmatprep.subr.mxu0 0.0
        %428 = vmatpush1.msra.mxu0 0.0
        %429 = vmatprep.subr.mxu0 0.0
        %430 = vmatpush1.msra.mxu0 0.0
        %431 = vmatprep.subr.mxu0 0.0
        %432 = vmatpush1.msra.mxu0 0.0
        %433 = vmatprep.subr.mxu0 0.0
        %434 = vmatpush1.msra.mxu0 0.0
        %435 = vmatprep.subr.mxu0 0.0
        %436 = vmatpush1.msra.mxu0 0.0
        %437 = vmatprep.subr.mxu0 0.0
        %438 = vmatpush1.msra.mxu0 0.0
        %439 = vmatprep.subr.mxu0 0.0
        %440 = vmatpush1.msra.mxu0 0.0
        %441 = vmatprep.subr.mxu0 0.0
        %442 = vmatpush1.msra.mxu0 0.0
        %443 = vmatprep.subr.mxu0 0.0
        %444 = vmatpush1.msra.mxu0 0.0
        %445 = vmatprep.subr.mxu0 0.0
        %446 = vmatpush1.msra.mxu0 0.0
        %447 = vmatprep.subr.mxu0 0.0
        %448 = vmatpush1.msra.mxu0 0.0
        %449 = vmatprep.subr.mxu0 0.0
        %450 = vmatpush1.msra.mxu0 0.0
        %451 = vmatprep.subr.mxu0 0.0
        %452 = vmatpush1.msra.mxu0 0.0
        %453 = vmatprep.subr.mxu0 0.0
        %454 = vmatpush1.msra.mxu0 0.0
        %455 = vmatprep.subr.mxu0 0.0
        %456 = vmatpush1.msra.mxu0 0.0
        %457 = vmatprep.subr.mxu0 0.0
        %458 = vmatpush1.msra.mxu0 0.0
        %459 = vmatprep.mubr.f32.mxu0 0.0
        %460 = vmatmul.mubr.f32.gmra.mrb[0].mxu0 %v384
        %v461 = vpop.f32.mrb[0].mxu0
        %v462 = vadd.f32 %v365, %v461
        %v463 = vpop.f32.mrb[0].mxu0
        %v464 = vadd.f32 %v365, %v463
        %465 = vmatprep.mubr.f32.mxu0 0.0
        %466 = vmatmul.mubr.f32.gmra.mrb[0].mxu0 %v387
        %v467 = vpop.f32.mrb[0].mxu0
        %v468 = vadd.f32 %v370, %v467
        %v469 = vpop.f32.mrb[0].mxu0
        %v470 = vadd.f32 %v370, %v469
        %471 = vmatprep.mubr.f32.mxu0 0.0
        %472 = vmatmul.mubr.f32.gmra.mrb[0].mxu0 %v390
        %v473 = vpop.f32.mrb[0].mxu0
        %v474 = vadd.f32 %v375, %v473
        %v475 = vpop.f32.mrb[0].mxu0
        %v476 = vadd.f32 %v375, %v475
        %477 = vmatprep.mubr.f32.mxu0 0.0
        %478 = vmatmul.mubr.f32.gmra.mrb[0].mxu0 %v393
        %v479 = vpop.f32.mrb[0].mxu0
        %v480 = vadd.f32 %v380, %v479
        %v481 = vpop.f32.mrb[0].mxu0
        %v482 = vadd.f32 %v380, %v481
        %483 = vdwg.mxu0
        %484 = vmatprep.subr.mxu0 %v357
        %485 = vmatpush1.msra.mxu0 %v356
        %486 = vmatprep.subr.mxu0 %v361
        %487 = vmatpush1.msra.mxu0 %v360
        %488 = vmatprep.subr.mxu0 0.0
        %489 = vmatpush1.msra.mxu0 0.0
        %490 = vmatprep.subr.mxu0 0.0
        %491 = vmatpush1.msra.mxu0 0.0
        %492 = vmatprep.subr.mxu0 0.0
        %493 = vmatpush1.msra.mxu0 0.0
        %494 = vmatprep.subr.mxu0 0.0
        %495 = vmatpush1.msra.mxu0 0.0
        %496 = vmatprep.subr.mxu0 0.0
        %497 = vmatpush1.msra.mxu0 0.0
        %498 = vmatprep.subr.mxu0 0.0
        %499 = vmatpush1.msra.mxu0 0.0
        %500 = vmatprep.subr.mxu0 0.0
        %501 = vmatpush1.msra.mxu0 0.0
        %502 = vmatprep.subr.mxu0 0.0
        %503 = vmatpush1.msra.mxu0 0.0
        %504 = vmatprep.subr.mxu0 0.0
        %505 = vmatpush1.msra.mxu0 0.0
        %506 = vmatprep.subr.mxu0 0.0
        %507 = vmatpush1.msra.mxu0 0.0
        %508 = vmatprep.subr.mxu0 0.0
        %509 = vmatpush1.msra.mxu0 0.0
        %510 = vmatprep.subr.mxu0 0.0
        %511 = vmatpush1.msra.mxu0 0.0
        %512 = vmatprep.subr.mxu0 0.0
        %513 = vmatpush1.msra.mxu0 0.0
        %514 = vmatprep.subr.mxu0 0.0
        %515 = vmatpush1.msra.mxu0 0.0
        %516 = vmatprep.subr.mxu0 0.0
        %517 = vmatpush1.msra.mxu0 0.0
        %518 = vmatprep.subr.mxu0 0.0
        %519 = vmatpush1.msra.mxu0 0.0
        %520 = vmatprep.subr.mxu0 0.0
        %521 = vmatpush1.msra.mxu0 0.0
        %522 = vmatprep.subr.mxu0 0.0
        %523 = vmatpush1.msra.mxu0 0.0
        %524 = vmatprep.subr.mxu0 0.0
        %525 = vmatpush1.msra.mxu0 0.0
        %526 = vmatprep.subr.mxu0 0.0
        %527 = vmatpush1.msra.mxu0 0.0
        %528 = vmatprep.subr.mxu0 0.0
        %529 = vmatpush1.msra.mxu0 0.0
        %530 = vmatprep.subr.mxu0 0.0
        %531 = vmatpush1.msra.mxu0 0.0
        %532 = vmatprep.subr.mxu0 0.0
        %533 = vmatpush1.msra.mxu0 0.0
        %534 = vmatprep.subr.mxu0 0.0
        %535 = vmatpush1.msra.mxu0 0.0
        %536 = vmatprep.subr.mxu0 0.0
        %537 = vmatpush1.msra.mxu0 0.0
        %538 = vmatprep.subr.mxu0 0.0
        %539 = vmatpush1.msra.mxu0 0.0
        %540 = vmatprep.subr.mxu0 0.0
        %541 = vmatpush1.msra.mxu0 0.0
        %542 = vmatprep.subr.mxu0 0.0
        %543 = vmatpush1.msra.mxu0 0.0
        %544 = vmatprep.subr.mxu0 0.0
        %545 = vmatpush1.msra.mxu0 0.0
        %546 = vmatprep.subr.mxu0 0.0
        %547 = vmatpush1.msra.mxu0 0.0
        %548 = vmatprep.mubr.f32.mxu0 0.0
        %549 = vmatmul.mubr.f32.gmra.mrb[0].mxu0 %v384
        %v550 = vpop.f32.mrb[0].mxu0
        %v551 = vadd.f32 %v365, %v550
        %v552 = vpop.f32.mrb[0].mxu0
        %v553 = vadd.f32 %v365, %v552
        %554 = vmatprep.mubr.f32.mxu0 0.0
        %555 = vmatmul.mubr.f32.gmra.mrb[0].mxu0 %v387
        %v556 = vpop.f32.mrb[0].mxu0
        %v557 = vadd.f32 %v370, %v556
        %v558 = vpop.f32.mrb[0].mxu0
        %v559 = vadd.f32 %v370, %v558
        %560 = vmatprep.mubr.f32.mxu0 0.0
        %561 = vmatmul.mubr.f32.gmra.mrb[0].mxu0 %v390
        %v562 = vpop.f32.mrb[0].mxu0
        %v563 = vadd.f32 %v375, %v562
        %v564 = vpop.f32.mrb[0].mxu0
        %v565 = vadd.f32 %v375, %v564
        %566 = vmatprep.mubr.f32.mxu0 0.0
        %567 = vmatmul.mubr.f32.gmra.mrb[0].mxu0 %v393
        %v568 = vpop.f32.mrb[0].mxu0
        %v569 = vadd.f32 %v380, %v568
        %v570 = vpop.f32.mrb[0].mxu0
        %v571 = vadd.f32 %v380, %v570
        %572 = vdwg.mxu0
        %v573 = vmax.f32 %v462, 0.0
        %v574 = vmax.f32 %v464, 0.0
        %v575 = vmax.f32 %v551, 0.0
        %v576 = vmax.f32 %v553, 0.0
        %v577 = vmax.f32 %v468, 0.0
        %v578 = vmax.f32 %v470, 0.0
        %v579 = vmax.f32 %v557, 0.0
        %v580 = vmax.f32 %v559, 0.0
        %v581 = vmax.f32 %v474, 0.0
        %v582 = vmax.f32 %v476, 0.0
        %v583 = vmax.f32 %v563, 0.0
        %v584 = vmax.f32 %v565, 0.0
        %v585 = vmax.f32 %v480, 0.0
        %v586 = vmax.f32 %v482, 0.0
        %v587 = vmax.f32 %v569, 0.0
        %v588 = vmax.f32 %v571, 0.0
        %590 = vset.pattern.permute.xlu0 0
        %591 = vperm.xlu0 %590, %v291
        %v592 = vpop.permute.xlu0 %591
        %595 = vset.pattern.permute.xlu0 0
        %596 = vperm.xlu0 %595, %v292
        %v597 = vpop.permute.xlu0 %596
        %600 = vset.pattern.permute.xlu0 0
        %601 = vperm.xlu0 %600, %v293
        %v602 = vpop.permute.xlu0 %601
        %605 = vset.pattern.permute.xlu0 0
        %606 = vperm.xlu0 %605, %v294
        %v607 = vpop.permute.xlu0 %606
        %v609 = vmul.f32 %v592, %v573
        %v610 = vmul.f32 %v592, %v574
        %v611 = vmul.f32 %v592, %v575
        %v612 = vmul.f32 %v592, %v576
        %v613 = vmul.f32 %v597, %v577
        %v614 = vmul.f32 %v597, %v578
        %v615 = vmul.f32 %v597, %v579
        %v616 = vmul.f32 %v597, %v580
        %v617 = vmul.f32 %v602, %v581
        %v618 = vmul.f32 %v602, %v582
        %v619 = vmul.f32 %v602, %v583
        %v620 = vmul.f32 %v602, %v584
        %v621 = vmul.f32 %v607, %v585
        %v622 = vmul.f32 %v607, %v586
        %v623 = vmul.f32 %v607, %v587
        %v624 = vmul.f32 %v607, %v588
        %v625 = vadd.f32 %v609, %v613
        %v626 = vadd.f32 %v625, %v617
        %v627 = vadd.f32 %v626, %v621
        %v628 = vrot.slane %v627, 4
        %v629 = vadd.f32 %v627, %v628
        %v630 = vrot.slane %v629, 2
        %v631 = vadd.f32 %v629, %v630
        %v632 = vrot.slane %v631, 1
        %v633 = vadd.f32 %v631, %v632
        %v634 = vadd.f32 %v610, %v614
        %v635 = vadd.f32 %v634, %v618
        %v636 = vadd.f32 %v635, %v622
        %v637 = vrot.slane %v636, 4
        %v638 = vadd.f32 %v636, %v637
        %v639 = vrot.slane %v638, 2
        %v640 = vadd.f32 %v638, %v639
        %v641 = vrot.slane %v640, 1
        %v642 = vadd.f32 %v640, %v641
        %v643 = vadd.f32 %v611, %v615
        %v644 = vadd.f32 %v643, %v619
        %v645 = vadd.f32 %v644, %v623
        %v646 = vrot.slane %v645, 4
        %v647 = vadd.f32 %v645, %v646
        %v648 = vrot.slane %v647, 2
        %v649 = vadd.f32 %v647, %v648
        %v650 = vrot.slane %v649, 1
        %v651 = vadd.f32 %v649, %v650
        %v652 = vadd.f32 %v612, %v616
        %v653 = vadd.f32 %v652, %v620
        %v654 = vadd.f32 %v653, %v624
        %v655 = vrot.slane %v654, 4
        %v656 = vadd.f32 %v654, %v655
        %v657 = vrot.slane %v656, 2
        %v658 = vadd.f32 %v656, %v657
        %v659 = vrot.slane %v658, 1
        %v660 = vadd.f32 %v658, %v659
        %662 = vset.pattern.permute.xlu0 0
        %663 = vperm.xlu0 %662, %v295
        %v664 = vpop.permute.xlu0 %663
        %v666 = vlaneseq
        %v667 = vshrl.u32 %v666, 7
        %v668 = vsub.s32 0, %v667
        %v669 = vrot.slane %v664, %v668
        %v670 = vadd.f32 %v633, %v669
        %v671 = vadd.f32 %v642, %v669
        %v672 = vadd.f32 %v651, %v669
        %v673 = vadd.f32 %v660, %v669
        %v678 = vcombine.low %v670, %v671
        %v679 = vcombine.low %v672, %v673
        %v681 = vunpack.c.l.s4 1966171168
        %v682 = vunpack.c.0.s8 %v681
        %v683 = vlaneseq
        %v684 = vshrl.u32 %v683, 7
        %v685 = vsub.s32 %v682, %v684
        %v686 = vrot.slane %v678, %v685
        %v688 = vunpack.c.l.s4 1966171168
        %v689 = vunpack.c.0.s8 %v688
        %v690 = vlaneseq
        %v691 = vshrl.u32 %v690, 7
        %v692 = vsub.s32 %v689, %v691
        %v693 = vrot.slane %v679, %v692
        %v694 = vcombine.low %v686, %v693
        %v696 = vunpack.c.l.s4 1966171168
        %v697 = vunpack.c.0.s8 %v696
        %v698 = vlaneseq
        %v699 = vshrl.u32 %v698, 7
        %v700 = vsub.s32 %v697, %v699
        %v701 = vrot.slane %v694, %v700
        %v703 = vlaneseq
        %vm704 = vcmp.ge.s32.totalorder %v703, 0
        %vm705 = vcmp.lt.s32.totalorder %v703, 512
        %vm706 = vmand %vm704, %vm705
        %707 = vst.msk [vmem:[%s272] sm:$0xf] %vm706, %v701
        %s708 = sand.u32 %s183, 1
        %s709 = scalar_lea.sflag [#allocation4], %s708
        %s710 = sand.u32 %s183, 1
        %s711 = smul.addr %s710, 4
        %s712 = scalar_lea.vmem [#allocation3], %s711
        // Predicated region
        $region49: #{mlp_forward.1} parent=47 // pred_check
          %p713 = pneg %p193
        $region50: #{mlp_forward.1} parent=47 // pred_check_branch
          %715 = sbr.rel (%p713) target = $region52
        $region51: #{mlp_forward.1} parent=47 // pred_region
          %s716 = smul.u32 4, %s23
          %s718 = ssub.s32 64, 64
          %719 = vsyncadd %s709, %s718
          %s720 = smul.addr %s716, 16
          %s721 = scalar_lea.hbm %s7, %s720
          %s723 = sshll.u32 %s712, 4
          %s724 = int_to_ptr.vmem [resolvable:$true] %s723
          %726 = dma.vmem_to_hbm [thread:$0]  %s724, 64, %s721, %s709
        $region52: #{mlp_forward.1} parent=47 // pred_fallthru
          _
      $region48: #{mlp_forward.1} parent=5 // pred_fallthru
        _
      %p727 = scmp.le.s32.totalorder 2, %s18
      // Predicated region
      $region53: #{mlp_forward.1} parent=5 // pred_check
        %p728 = pneg %p727
      $region54: #{mlp_forward.1} parent=5 // pred_check_branch
        %730 = sbr.rel (%p728) target = $region56
      $region55: #{mlp_forward.1} parent=5 // pred_region
        %s731 = ssub.s32 %s18, 2
        // Predicated region
        $region57: #{mlp_forward.1} parent=55 // pred_check
          %p732 = pneg %p199
        $region58: #{mlp_forward.1} parent=55 // pred_check_branch
          %734 = sbr.rel (%p732) target = $region60
        $region59: #{mlp_forward.1} parent=55 // pred_region
          %s735 = sand.u32 %s184, 1
          %s736 = scalar_lea.sflag [#allocation4], %s735
          %s737 = sand.u32 %s184, 1
          %s738 = smul.addr %s737, 4
          %s739 = scalar_lea.vmem [#allocation3], %s738
          %740 = dma.done %s736, 64
        $region60: #{mlp_forward.1} parent=55 // pred_fallthru
          _
      $region56: #{mlp_forward.1} parent=5 // pred_fallthru
        _
    $region6: #{mlp_forward.1} parent=1 // loop_footer
      %s22 = sadd.s32 1, %s18
    $region7: #{mlp_forward.1} parent=1 // loop_footer_branch
      %17 = sbr.rel target = $region3
    $region8: #{mlp_forward.1} parent=1 // loop_exit
      _
    %741 = vsyncpa [#allocation4], 1
    %s742 = scalar_lea.sflag [#allocation4], 1
    %743 = vsyncpa %s742, 1

</llo_original>
